<compile_context>
chip_gen: v5e
topology: v5e:2x2
jax: 0.10.0
libtpu: 0.0.40
codegen_flags: <defaults>
</compile_context>

<pallas_src>
import jax
import jax.numpy as jnp
from jax.experimental import pallas as pl
from jax.experimental.pallas import tpu as pltpu


def _cdiv(a, b):
    return -(-a // b)


def _round_up(a, m):
    return _cdiv(a, m) * m


def _make_psnr_kernel(n_valid, tiles_per_split, needs_mask):
    """Builds the per-tile reduction kernel.

    Outputs (per split c): sq_ref/mx_ref/mn_ref are (1, 8, 128) f32 accumulators
    that stay VMEM-resident across the inner (reduction) grid axis.
    """

    def kernel(t_ref, p_ref, sq_ref, mx_ref, mn_ref):
        c = pl.program_id(0)          # parallel split (TensorCore on v7x)
        j = pl.program_id(1)          # reduction step within the split

        @pl.when(j == 0)
        def _init():
            sq_ref[...] = jnp.zeros_like(sq_ref)
            mx_ref[...] = jnp.full(mx_ref.shape, -jnp.inf, jnp.float32)
            mn_ref[...] = jnp.full(mn_ref.shape, jnp.inf, jnp.float32)

        # Cast in-kernel: inputs stay in their native (possibly narrow) dtype
        # in HBM; this kernel is HBM-bandwidth bound.
        t = t_ref[...].astype(jnp.float32)       # (T, 128)
        p = p_ref[...].astype(jnp.float32)
        T, L = t.shape

        diff = t - p
        sq = diff * diff
        if needs_mask:
            # Mask tail rows / lane padding / duplicated overflow blocks using
            # the *nominal* flat element index of this tile.
            row = jax.lax.broadcasted_iota(jnp.int32, (T, L), 0)
            lane = jax.lax.broadcasted_iota(jnp.int32, (T, L), 1)
            flat = ((c * tiles_per_split + j) * T + row) * L + lane
            valid = flat < n_valid
            sq = jnp.where(valid, sq, 0.0)
            t_mx = jnp.where(valid, t, -jnp.inf)
            t_mn = jnp.where(valid, t, jnp.inf)
        else:
            t_mx = t
            t_mn = t

        # VPU-only per-step reduction: fold (T,128) -> (T//8, 8, 128) (tile-
        # aligned, layout-preserving) and reduce the leading axis.  No XLU
        # cross-lane/cross-sublane work and no EUP ops in the steady state.
        sq_part = jnp.sum(sq.reshape(T // 8, 8, L), axis=0)
        mx_part = jnp.max(t_mx.reshape(T // 8, 8, L), axis=0)
        mn_part = jnp.min(t_mn.reshape(T // 8, 8, L), axis=0)

        sq_ref[...] = sq_ref[...] + sq_part[None]
        mx_ref[...] = jnp.maximum(mx_ref[...], mx_part[None])
        mn_ref[...] = jnp.minimum(mn_ref[...], mn_part[None])

    return kernel


def psnr_loss(pred, target, *, tile_rows=2048, num_splits=2):
    """pred, target: NCHW arrays (any float dtype). Returns scalar f32 PSNR of
    the [0,0] plane, with data_range = ptp(target[0,0]).

    tile_rows: rows (of 128 lanes) per grid step; 2048 rows ~= 1 MiB f32 per
    input tile (sweep per generation).  num_splits: leading "parallel" grid
    axis so v7x's 2 TensorCores each scan half the rows.
    """
    assert pred.shape == target.shape and pred.ndim == 4
    N, C, H, W = target.shape
    n_valid = H * W

    if n_valid % 1024 == 0:
        # Fused path: metadata-only reshape of the full contiguous NCHW arrays;
        # the [0,0] plane is DMA'd straight from HBM via Squeezed BlockSpec
        # dims (no wrapper slice / convert / copy).  rows is a multiple of 8.
        rows = n_valid // 128
        t_v = target.reshape(N, C, rows, 128)
        p_v = pred.reshape(N, C, rows, 128)
        fused = True
    else:
        # Lane-dense fallback: slice the [0,0] plane, flatten, zero-pad to a
        # multiple of 1024 (=> rows % 8 == 0, every vreg 128-lane dense) and
        # mask the tail in-kernel.  Wrapper ops touch only the single plane.
        rows = _round_up(n_valid, 1024) // 128
        pad = rows * 128 - n_valid
        t_v = jnp.pad(target[0, 0].reshape(-1), (0, pad)).reshape(rows, 128)
        p_v = jnp.pad(pred[0, 0].reshape(-1), (0, pad)).reshape(rows, 128)
        fused = False

    # Tile / split derivation.  rows % 8 == 0 in both paths, so T (multiple of
    # 8) never exceeds rows and blocks never exceed the array dims.
    num_splits_eff = max(1, min(num_splits, rows // 8))
    tile_rows = max(8, (tile_rows // 8) * 8)
    T = min(tile_rows, _round_up(_cdiv(rows, num_splits_eff), 8))
    tiles_total = _cdiv(rows, T)
    tiles_per_split = _cdiv(tiles_total, num_splits_eff)
    covered = num_splits_eff * tiles_per_split * T * 128
    needs_mask = covered != n_valid
    last_blk = tiles_total - 1

    # Clamp the block index so overflow blocks (when tiles_total doesn't divide
    # evenly across splits) re-read the last in-range block; their contribution
    # is masked out via the nominal flat index in the kernel.
    def row_blk(c, j):
        return jnp.minimum(c * tiles_per_split + j, last_blk)

    if fused:
        in_spec = pl.BlockSpec(
            (pl.Squeezed(), pl.Squeezed(), T, 128),
            lambda c, j: (0, 0, row_blk(c, j), 0),
        )
    else:
        in_spec = pl.BlockSpec((T, 128), lambda c, j: (row_blk(c, j), 0))

    # Output-resident accumulators: same block index across the reduction axis.
    acc_spec = pl.BlockSpec((1, 8, 128), lambda c, j: (c, 0, 0))
    acc_shape = jax.ShapeDtypeStruct((num_splits_eff, 8, 128), jnp.float32)

    kernel = _make_psnr_kernel(n_valid, tiles_per_split, needs_mask)

    sq_p, mx_p, mn_p = pl.pallas_call(
        kernel,
        out_shape=(acc_shape, acc_shape, acc_shape),
        grid_spec=pltpu.PrefetchScalarGridSpec(
            num_scalar_prefetch=0,
            grid=(num_splits_eff, tiles_per_split),
            in_specs=[in_spec, in_spec],
            out_specs=(acc_spec, acc_spec, acc_spec),
        ),
        compiler_params=pltpu.CompilerParams(
            dimension_semantics=("parallel", "arbitrary"),
        ),
    )(t_v, p_v)

    # Trivial combine of the (splits, 8, 128) partials + the one-time log.
    mse = jnp.sum(sq_p) / float(n_valid)
    data_range = jnp.max(mx_p) - jnp.min(mn_p)
    return 10.0 * jnp.log10(data_range * data_range / mse)


def _ref_psnr(pred, target):
    t = target[0, 0].astype(jnp.float32)
    p = pred[0, 0].astype(jnp.float32)
    mse = jnp.mean((t - p) ** 2)
    dr = jnp.max(t) - jnp.min(t)
    return 10.0 * jnp.log10(dr * dr / mse)


if __name__ == "__main__":
    key = jax.random.PRNGKey(0)
    k_pred, k_tgt = jax.random.split(key)

    # Primary small case consistent with the module's NCHW convention
    # (exercises the padded / masked fallback path, H*W = 256).
    pred = jax.random.uniform(k_pred, (2, 4, 16, 16), dtype=jnp.float32)
    target = jax.random.uniform(k_tgt, (2, 4, 16, 16), dtype=jnp.float32)
    loss = psnr_loss(pred, target)
    jax.block_until_ready(loss)
    ref = _ref_psnr(pred, target)
    assert jnp.allclose(loss, ref, rtol=1e-4, atol=1e-4), (loss, ref)

    # Fused-path check (H*W % 1024 == 0), both splits active.
    k1, k2 = jax.random.split(jax.random.PRNGKey(1))
    pred2 = jax.random.uniform(k1, (1, 2, 64, 64), dtype=jnp.float32)
    target2 = jax.random.uniform(k2, (1, 2, 64, 64), dtype=jnp.float32)
    loss2 = psnr_loss(pred2, target2)
    jax.block_until_ready(loss2)
    ref2 = _ref_psnr(pred2, target2)
    assert jnp.allclose(loss2, ref2, rtol=1e-4, atol=1e-4), (loss2, ref2)

    # Multi-tile accumulation per split (small tile_rows to force several
    # reduction steps) and clamped overflow-block + mask path.
    loss3 = psnr_loss(pred2, target2, tile_rows=8)
    jax.block_until_ready(loss3)
    assert jnp.allclose(loss3, ref2, rtol=1e-4, atol=1e-4), (loss3, ref2)

    k3, k4 = jax.random.split(jax.random.PRNGKey(2))
    pred4 = jax.random.uniform(k3, (1, 1, 48, 64), dtype=jnp.float32)
    target4 = jax.random.uniform(k4, (1, 1, 48, 64), dtype=jnp.float32)
    loss4 = psnr_loss(pred4, target4, tile_rows=8)
    jax.block_until_ready(loss4)
    ref4 = _ref_psnr(pred4, target4)
    assert jnp.allclose(loss4, ref4, rtol=1e-4, atol=1e-4), (loss4, ref4)

    print("KERNEL_OK")
</pallas_src>

<mosaic_0001>
module attributes {stable_mosaic.version = 11 : i64} {
  func.func @kernel(%arg0: i32, %arg1: i32, %arg2: memref<8x128xf32, #tpu.memory_space<vmem>>, %arg3: memref<8x128xf32, #tpu.memory_space<vmem>>, %arg4: memref<1x8x128xf32, #tpu.memory_space<vmem>>, %arg5: memref<1x8x128xf32, #tpu.memory_space<vmem>>, %arg6: memref<1x8x128xf32, #tpu.memory_space<vmem>>) attributes {dimension_semantics = [#tpu.dimension_semantics<parallel>, #tpu.dimension_semantics<arbitrary>], iteration_bounds = array<i64: 1, 1>, scalar_prefetch = 0 : i64, scratch_operands = 0 : i64, tpu.core_type = #tpu.core_type<tc>, window_params = [{transform_indices = @transform_0, window_bounds = array<i64: 8, 128>}, {transform_indices = @transform_1, window_bounds = array<i64: 8, 128>}, {transform_indices = @transform_2, window_bounds = array<i64: 1, 8, 128>}, {transform_indices = @transform_3, window_bounds = array<i64: 1, 8, 128>}, {transform_indices = @transform_4, window_bounds = array<i64: 1, 8, 128>}]} {
    %c0_i32 = arith.constant 0 : i32
    %0 = arith.cmpi eq, %arg1, %c0_i32 : i32
    %1 = arith.extui %0 : i1 to i32
    %c0_i32_0 = arith.constant 0 : i32
    %2 = arith.cmpi ne, %1, %c0_i32_0 : i32
    scf.if %2 {
      %cst_27 = arith.constant 0.000000e+00 : f32
      %43 = vector.broadcast %cst_27 : f32 to vector<1x8x128xf32>
      %c0_28 = arith.constant 0 : index
      %c0_29 = arith.constant 0 : index
      %c0_30 = arith.constant 0 : index
      %44 = vector.load %arg4[%c0_28, %c0_29, %c0_30] : memref<1x8x128xf32, #tpu.memory_space<vmem>>, vector<1x8x128xf32>
      tpu.vector_store %arg4[%c0_28, %c0_29, %c0_30], %43 {strides = array<i32>} : memref<1x8x128xf32, #tpu.memory_space<vmem>>, vector<1x8x128xf32>,
      %cst_31 = arith.constant 0xFF800000 : f32
      %45 = vector.broadcast %cst_31 : f32 to vector<1x8x128xf32>
      %c0_32 = arith.constant 0 : index
      %c0_33 = arith.constant 0 : index
      %c0_34 = arith.constant 0 : index
      %46 = vector.load %arg5[%c0_32, %c0_33, %c0_34] : memref<1x8x128xf32, #tpu.memory_space<vmem>>, vector<1x8x128xf32>
      tpu.vector_store %arg5[%c0_32, %c0_33, %c0_34], %45 {strides = array<i32>} : memref<1x8x128xf32, #tpu.memory_space<vmem>>, vector<1x8x128xf32>,
      %cst_35 = arith.constant 0x7F800000 : f32
      %47 = vector.broadcast %cst_35 : f32 to vector<1x8x128xf32>
      %c0_36 = arith.constant 0 : index
      %c0_37 = arith.constant 0 : index
      %c0_38 = arith.constant 0 : index
      %48 = vector.load %arg6[%c0_36, %c0_37, %c0_38] : memref<1x8x128xf32, #tpu.memory_space<vmem>>, vector<1x8x128xf32>
      tpu.vector_store %arg6[%c0_36, %c0_37, %c0_38], %47 {strides = array<i32>} : memref<1x8x128xf32, #tpu.memory_space<vmem>>, vector<1x8x128xf32>,
    } else {
    }
    %c0 = arith.constant 0 : index
    %c0_1 = arith.constant 0 : index
    %3 = vector.load %arg2[%c0, %c0_1] : memref<8x128xf32, #tpu.memory_space<vmem>>, vector<8x128xf32>
    %c0_2 = arith.constant 0 : index
    %c0_3 = arith.constant 0 : index
    %4 = vector.load %arg3[%c0_2, %c0_3] : memref<8x128xf32, #tpu.memory_space<vmem>>, vector<8x128xf32>
    %5 = arith.subf %3, %4 : vector<8x128xf32>
    %6 = arith.mulf %5, %5 : vector<8x128xf32>
    %7 = tpu.iota {dimensions = array<i32: 0>} : vector<8x128xi32>
    %8 = tpu.iota {dimensions = array<i32: 1>} : vector<8x128xi32>
    %c1_i32 = arith.constant 1 : i32
    %9 = arith.muli %arg0, %c1_i32 : i32
    %10 = arith.addi %9, %arg1 : i32
    %c8_i32 = arith.constant 8 : i32
    %11 = arith.muli %10, %c8_i32 : i32
    %12 = vector.broadcast %11 : i32 to vector<8x128xi32>
    %13 = arith.addi %12, %7 : vector<8x128xi32>
    %c128_i32 = arith.constant 128 : i32
    %14 = vector.broadcast %c128_i32 : i32 to vector<8x128xi32>
    %15 = arith.muli %13, %14 : vector<8x128xi32>
    %16 = arith.addi %15, %8 : vector<8x128xi32>
    %c256_i32 = arith.constant 256 : i32
    %17 = vector.broadcast %c256_i32 : i32 to vector<8x128xi32>
    %18 = arith.cmpi slt, %16, %17 : vector<8x128xi32>
    %cst = arith.constant 0.000000e+00 : f32
    %19 = vector.broadcast %cst : f32 to vector<8x128xf32>
    %20 = arith.select %18, %6, %19 : vector<8x128xi1>, vector<8x128xf32>
    %cst_4 = arith.constant 0xFF800000 : f32
    %21 = vector.broadcast %cst_4 : f32 to vector<8x128xf32>
    %22 = arith.select %18, %3, %21 : vector<8x128xi1>, vector<8x128xf32>
    %cst_5 = arith.constant 0x7F800000 : f32
    %23 = vector.broadcast %cst_5 : f32 to vector<8x128xf32>
    %24 = arith.select %18, %3, %23 : vector<8x128xi1>, vector<8x128xf32>
    %25 = vector.shape_cast %20 : vector<8x128xf32> to vector<1x8x128xf32>
    %cst_6 = arith.constant dense<0.000000e+00> : vector<8x128xf32>
    %26 = vector.multi_reduction <add>, %25, %cst_6 [0] : vector<1x8x128xf32> to vector<8x128xf32>
    %27 = vector.shape_cast %22 : vector<8x128xf32> to vector<1x8x128xf32>
    %cst_7 = arith.constant dense<0xFF800000> : vector<8x128xf32>
    %28 = vector.multi_reduction <maximumf>, %27, %cst_7 [0] : vector<1x8x128xf32> to vector<8x128xf32>
    %29 = vector.shape_cast %24 : vector<8x128xf32> to vector<1x8x128xf32>
    %cst_8 = arith.constant dense<0x7F800000> : vector<8x128xf32>
    %30 = vector.multi_reduction <minimumf>, %29, %cst_8 [0] : vector<1x8x128xf32> to vector<8x128xf32>
    %c0_9 = arith.constant 0 : index
    %c0_10 = arith.constant 0 : index
    %c0_11 = arith.constant 0 : index
    %31 = vector.load %arg4[%c0_9, %c0_10, %c0_11] : memref<1x8x128xf32, #tpu.memory_space<vmem>>, vector<1x8x128xf32>
    %32 = vector.shape_cast %26 : vector<8x128xf32> to vector<1x8x128xf32>
    %33 = arith.addf %31, %32 : vector<1x8x128xf32>
    %c0_12 = arith.constant 0 : index
    %c0_13 = arith.constant 0 : index
    %c0_14 = arith.constant 0 : index
    %34 = vector.load %arg4[%c0_12, %c0_13, %c0_14] : memref<1x8x128xf32, #tpu.memory_space<vmem>>, vector<1x8x128xf32>
    tpu.vector_store %arg4[%c0_12, %c0_13, %c0_14], %33 {strides = array<i32>} : memref<1x8x128xf32, #tpu.memory_space<vmem>>, vector<1x8x128xf32>,
    %c0_15 = arith.constant 0 : index
    %c0_16 = arith.constant 0 : index
    %c0_17 = arith.constant 0 : index
    %35 = vector.load %arg5[%c0_15, %c0_16, %c0_17] : memref<1x8x128xf32, #tpu.memory_space<vmem>>, vector<1x8x128xf32>
    %36 = vector.shape_cast %28 : vector<8x128xf32> to vector<1x8x128xf32>
    %37 = arith.maximumf %35, %36 : vector<1x8x128xf32>
    %c0_18 = arith.constant 0 : index
    %c0_19 = arith.constant 0 : index
    %c0_20 = arith.constant 0 : index
    %38 = vector.load %arg5[%c0_18, %c0_19, %c0_20] : memref<1x8x128xf32, #tpu.memory_space<vmem>>, vector<1x8x128xf32>
    tpu.vector_store %arg5[%c0_18, %c0_19, %c0_20], %37 {strides = array<i32>} : memref<1x8x128xf32, #tpu.memory_space<vmem>>, vector<1x8x128xf32>,
    %c0_21 = arith.constant 0 : index
    %c0_22 = arith.constant 0 : index
    %c0_23 = arith.constant 0 : index
    %39 = vector.load %arg6[%c0_21, %c0_22, %c0_23] : memref<1x8x128xf32, #tpu.memory_space<vmem>>, vector<1x8x128xf32>
    %40 = vector.shape_cast %30 : vector<8x128xf32> to vector<1x8x128xf32>
    %41 = arith.minimumf %39, %40 : vector<1x8x128xf32>
    %c0_24 = arith.constant 0 : index
    %c0_25 = arith.constant 0 : index
    %c0_26 = arith.constant 0 : index
    %42 = vector.load %arg6[%c0_24, %c0_25, %c0_26] : memref<1x8x128xf32, #tpu.memory_space<vmem>>, vector<1x8x128xf32>
    tpu.vector_store %arg6[%c0_24, %c0_25, %c0_26], %41 {strides = array<i32>} : memref<1x8x128xf32, #tpu.memory_space<vmem>>, vector<1x8x128xf32>,
    return
  }
  func.func @transform_0(%arg0: i32, %arg1: i32) -> (i32, i32) {
    %c1_i32 = arith.constant 1 : i32
    %0 = arith.muli %arg0, %c1_i32 : i32
    %1 = arith.addi %0, %arg1 : i32
    %c0_i32 = arith.constant 0 : i32
    %2 = arith.minsi %1, %c0_i32 : i32
    %c0_i32_0 = arith.constant 0 : i32
    %c0_i32_1 = arith.constant 0 : i32
    return %2, %c0_i32_0 : i32, i32
  }
  func.func @transform_1(%arg0: i32, %arg1: i32) -> (i32, i32) {
    %c1_i32 = arith.constant 1 : i32
    %0 = arith.muli %arg0, %c1_i32 : i32
    %1 = arith.addi %0, %arg1 : i32
    %c0_i32 = arith.constant 0 : i32
    %2 = arith.minsi %1, %c0_i32 : i32
    %c0_i32_0 = arith.constant 0 : i32
    %c0_i32_1 = arith.constant 0 : i32
    return %2, %c0_i32_0 : i32, i32
  }
  func.func @transform_2(%arg0: i32, %arg1: i32) -> (i32, i32, i32) {
    %c0_i32 = arith.constant 0 : i32
    %c0_i32_0 = arith.constant 0 : i32
    %c0_i32_1 = arith.constant 0 : i32
    return %arg0, %c0_i32, %c0_i32_0 : i32, i32, i32
  }
  func.func @transform_3(%arg0: i32, %arg1: i32) -> (i32, i32, i32) {
    %c0_i32 = arith.constant 0 : i32
    %c0_i32_0 = arith.constant 0 : i32
    %c0_i32_1 = arith.constant 0 : i32
    return %arg0, %c0_i32, %c0_i32_0 : i32, i32, i32
  }
  func.func @transform_4(%arg0: i32, %arg1: i32) -> (i32, i32, i32) {
    %c0_i32 = arith.constant 0 : i32
    %c0_i32_0 = arith.constant 0 : i32
    %c0_i32_1 = arith.constant 0 : i32
    return %arg0, %c0_i32, %c0_i32_0 : i32, i32, i32
  }
}

</mosaic_0001>

<llo_original>
// kernel: tpu_custom_call.1
$region0: #{tpu_custom_call.1}
  #allocation0 [shape = 'u32[]', space=smem, size = 0x4, offset = 0x4, fixed_abs, tag = 'smem constant byte address 0x4 - core index']
  #allocation1 [shape = 'u32[72,128]{1,0:T(1,128)}', space=vmem, size = 0x9000, scoped, tag = 'internal scratch']
  %s0 = inlined_call_operand.hbm [shape: f32[8,128], index: 0, kind: input, shape index: {}]
  %s1 = inlined_call_operand.hbm [shape: f32[8,128], index: 1, kind: input, shape index: {}]
  %s2 = inlined_call_operand.hbm [shape: f32[1,8,128], index: 2, kind: output, shape index: {0}]
  %s3 = inlined_call_operand.hbm [shape: f32[1,8,128], index: 3, kind: output, shape index: {1}]
  %s4 = inlined_call_operand.hbm [shape: f32[1,8,128], index: 4, kind: output, shape index: {2}]
  %5 = xla_tuple %s2, %s3, %s4
  %s6 = sld [smem:[#allocation0]]
  $region46: #{tpu_custom_call.1} parent=0
    _
  %s8 = ssub.s32 1, %s6
  %s9 = scalar_select 0, %s8, %s6
  $region1: #{tpu_custom_call.1} parent=0
    #allocation2 [shape = 'u8[4096]{0}', space=vmem, size = 0x1000, scoped, tag = 'input window, operand 0, single buffered']
    #allocation3 [shape = 's32[1]{0}', space=sflag, size = 0x4, scoped, tag = 'scoped memory for tpu_custom_call.1']
    #allocation4 [shape = 's32[1]{0}', space=sflag, size = 0x4, scoped, tag = 'scoped memory for tpu_custom_call.1']
    #allocation5 [shape = 'u8[4096]{0}', space=vmem, size = 0x1000, scoped, tag = 'input window, operand 1, single buffered']
    #allocation6 [shape = 's32[1]{0}', space=sflag, size = 0x4, scoped, tag = 'scoped memory for tpu_custom_call.1']
    #allocation7 [shape = 'u8[4096]{0}', space=vmem, size = 0x1000, scoped, tag = 'output window, operand 0, single buffered']
    #allocation8 [shape = 'u8[4096]{0}', space=vmem, size = 0x1000, scoped, tag = 'output window, operand 1, single buffered']
    #allocation9 [shape = 's32[1]{0}', space=sflag, size = 0x4, scoped, tag = 'scoped memory for tpu_custom_call.1']
    #allocation10 [shape = 'u8[4096]{0}', space=vmem, size = 0x1000, scoped, tag = 'output window, operand 2, single buffered']
    %10 = vsyncpa [#allocation3], 0
    %11 = vsyncpa [#allocation6], 0
    %12 = vsyncpa [#allocation4], 0
    %13 = vsyncpa [#allocation9], 0
    // Predicated region
    $region2: #{tpu_custom_call.1} parent=1 // pred_check
      _
    $region3: #{tpu_custom_call.1} parent=1 // pred_check_branch
      %15 = sbr.rel (0) target = $region5
    $region4: #{tpu_custom_call.1} parent=1 // pred_region
      %s16 = sadd.s32 0, 0
      %p17 = scmp.lt.s32.totalorder %s16, 0
      %s18 = scalar_select %p17, %s16, 0
      %20 = vsyncadd [#allocation3], 0
      %s21 = smul.addr %s18, 8
      %s22 = scalar_lea.hbm %s0, %s21
      %s24 = sshll.u32 %s22, 4
      %s25 = int_to_ptr.hbm [resolvable:$true] %s24
      %s26 = sshll.u32 [#allocation2], 4
      %s27 = int_to_ptr.vmem [resolvable:$true] %s26
      %29 = dma.hbm_to_vmem [thread:$0]  %s25, 128, %s27, [#allocation3]
    $region5: #{tpu_custom_call.1} parent=1 // pred_fallthru
      _
    // Predicated region
    $region6: #{tpu_custom_call.1} parent=1 // pred_check
      _
    $region7: #{tpu_custom_call.1} parent=1 // pred_check_branch
      %31 = sbr.rel (0) target = $region9
    $region8: #{tpu_custom_call.1} parent=1 // pred_region
      %s32 = sadd.s32 0, 0
      %p33 = scmp.lt.s32.totalorder %s32, 0
      %s34 = scalar_select %p33, %s32, 0
      %36 = vsyncadd [#allocation6], 0
      %s37 = smul.addr %s34, 8
      %s38 = scalar_lea.hbm %s1, %s37
      %s40 = sshll.u32 %s38, 4
      %s41 = int_to_ptr.hbm [resolvable:$true] %s40
      %s42 = sshll.u32 [#allocation5], 4
      %s43 = int_to_ptr.vmem [resolvable:$true] %s42
      %45 = dma.hbm_to_vmem [thread:$0]  %s41, 128, %s43, [#allocation6]
    $region9: #{tpu_custom_call.1} parent=1 // pred_fallthru
      _
    // Predicated region
    $region10: #{tpu_custom_call.1} parent=1 // pred_check
      _
    $region11: #{tpu_custom_call.1} parent=1 // pred_check_branch
      %47 = sbr.rel (0) target = $region13
    $region12: #{tpu_custom_call.1} parent=1 // pred_region
      %49 = dma.done [#allocation3], 128
    $region13: #{tpu_custom_call.1} parent=1 // pred_fallthru
      _
    // Predicated region
    $region14: #{tpu_custom_call.1} parent=1 // pred_check
      _
    $region15: #{tpu_custom_call.1} parent=1 // pred_check_branch
      %51 = sbr.rel (0) target = $region17
    $region16: #{tpu_custom_call.1} parent=1 // pred_region
      %53 = dma.done [#allocation6], 128
    $region17: #{tpu_custom_call.1} parent=1 // pred_fallthru
      _
    %s54 = sadd.s32 0, 0
    %p55 = scmp.lt.s32.totalorder %s54, 0
    %s56 = scalar_select %p55, %s54, 0
    %s57 = sadd.s32 0, 0
    %p58 = scmp.lt.s32.totalorder %s57, 0
    %s59 = scalar_select %p58, %s57, 0
    %p60 = scmp.eq.s32.totalorder 0, 0
    // Predicated region
    $region18: #{tpu_custom_call.1} parent=1 // pred_check
      %p61 = pneg %p60
    $region19: #{tpu_custom_call.1} parent=1 // pred_check_branch
      %63 = sbr.rel (%p61) target = $region21
    $region20: #{tpu_custom_call.1} parent=1 // pred_region
      %64 = vst [vmem:[#allocation7] sm:$0xff] 0.0
      %65 = vst [vmem:[#allocation8] sm:$0xff] -inf
      %66 = vst [vmem:[#allocation10] sm:$0xff] inf
    $region21: #{tpu_custom_call.1} parent=1 // pred_fallthru
      _
    %v67 = vld [vmem:[#allocation2] sm:$0xff]
    %v68 = vld [vmem:[#allocation5] sm:$0xff]
    %v69 = vsub.f32 %v67, %v68
    %v70 = vmul.f32 %v69, %v69
    %v71 = vlaneseq
    %v72 = vshrl.u32 %v71, 7
    %v73 = vlaneseq
    %v74 = vand.u32 %v73, 127
    %s75 = sadd.s32 0, 0
    %s76 = smul.u32 %s75, 8
    %v77 = vstv %s76
    %v78 = vadd.s32 %v77, %v72
    %v79 = vmul.u32 %v78, 128
    %v80 = vadd.s32 %v79, %v74
    %vm81 = vcmp.lt.s32.totalorder %v80, 256
    %v82 = vsel %vm81, %v70, 0.0
    %v83 = vsel %vm81, %v67, -inf
    %v84 = vsel %vm81, %v67, inf
    %v85 = vadd.f32 %v82, 0.0
    %v86 = vld [vmem:[#allocation7] sm:$0xff]
    %v87 = vadd.f32 %v86, %v85
    %88 = vst [vmem:[#allocation7] sm:$0xff] %v87
    %v89 = vld [vmem:[#allocation8] sm:$0xff]
    %v90 = vmax.f32 %v89, %v83
    %91 = vst [vmem:[#allocation8] sm:$0xff] %v90
    %v92 = vld [vmem:[#allocation10] sm:$0xff]
    %v93 = vmin.f32 %v92, %v84
    %94 = vst [vmem:[#allocation10] sm:$0xff] %v93
    // Predicated region
    $region22: #{tpu_custom_call.1} parent=1 // pred_check
      _
    $region23: #{tpu_custom_call.1} parent=1 // pred_check_branch
      %96 = sbr.rel (0) target = $region25
    $region24: #{tpu_custom_call.1} parent=1 // pred_region
      %98 = vsyncadd [#allocation4], 0
      %s100 = sshll.u32 [#allocation7], 4
      %s101 = int_to_ptr.vmem [resolvable:$true] %s100
      %s102 = sshll.u32 %s2, 4
      %s103 = int_to_ptr.hbm [resolvable:$true] %s102
      %105 = dma.vmem_to_hbm [thread:$0]  %s101, 128, %s103, [#allocation4]
    $region25: #{tpu_custom_call.1} parent=1 // pred_fallthru
      _
    // Predicated region
    $region26: #{tpu_custom_call.1} parent=1 // pred_check
      _
    $region27: #{tpu_custom_call.1} parent=1 // pred_check_branch
      %107 = sbr.rel (0) target = $region29
    $region28: #{tpu_custom_call.1} parent=1 // pred_region
      %109 = vsyncadd [#allocation9], 0
      %s111 = sshll.u32 [#allocation8], 4
      %s112 = int_to_ptr.vmem [resolvable:$true] %s111
      %s113 = sshll.u32 %s3, 4
      %s114 = int_to_ptr.hbm [resolvable:$true] %s113
      %116 = dma.vmem_to_hbm [thread:$0]  %s112, 128, %s114, [#allocation9]
    $region29: #{tpu_custom_call.1} parent=1 // pred_fallthru
      _
    // Predicated region
    $region30: #{tpu_custom_call.1} parent=1 // pred_check
      _
    $region31: #{tpu_custom_call.1} parent=1 // pred_check_branch
      %118 = sbr.rel (0) target = $region33
    $region32: #{tpu_custom_call.1} parent=1 // pred_region
      %120 = vsyncadd [#allocation9], 0
      %s122 = sshll.u32 [#allocation10], 4
      %s123 = int_to_ptr.vmem [resolvable:$true] %s122
      %s124 = sshll.u32 %s4, 4
      %s125 = int_to_ptr.hbm [resolvable:$true] %s124
      %127 = dma.vmem_to_hbm [thread:$0]  %s123, 128, %s125, [#allocation9]
    $region33: #{tpu_custom_call.1} parent=1 // pred_fallthru
      _
    // Predicated region
    $region34: #{tpu_custom_call.1} parent=1 // pred_check
      _
    $region35: #{tpu_custom_call.1} parent=1 // pred_check_branch
      %129 = sbr.rel (0) target = $region37
    $region36: #{tpu_custom_call.1} parent=1 // pred_region
      %131 = dma.done [#allocation4], 128
    $region37: #{tpu_custom_call.1} parent=1 // pred_fallthru
      _
    // Predicated region
    $region38: #{tpu_custom_call.1} parent=1 // pred_check
      _
    $region39: #{tpu_custom_call.1} parent=1 // pred_check_branch
      %133 = sbr.rel (0) target = $region41
    $region40: #{tpu_custom_call.1} parent=1 // pred_region
      %135 = dma.done [#allocation9], 128
    $region41: #{tpu_custom_call.1} parent=1 // pred_fallthru
      _
    // Predicated region
    $region42: #{tpu_custom_call.1} parent=1 // pred_check
      _
    $region43: #{tpu_custom_call.1} parent=1 // pred_check_branch
      %137 = sbr.rel (0) target = $region45
    $region44: #{tpu_custom_call.1} parent=1 // pred_region
      %139 = dma.done [#allocation9], 128
    $region45: #{tpu_custom_call.1} parent=1 // pred_fallthru
      _
    %140 = vsyncpa [#allocation3], 1
    %141 = vsyncpa [#allocation6], 1
    %142 = vsyncpa [#allocation4], 1
    %143 = vsyncpa [#allocation9], 1

</llo_original>
